<compile_context>
chip_gen: v7x
topology: tpu7x:2x2x1
jax: 0.10.0
libtpu: 0.0.40
codegen_flags: <defaults>
</compile_context>

<pallas_src>
import functools
import math

import jax
import jax.numpy as jnp
import numpy as np
from jax import lax
from jax.experimental import pallas as pl
from jax.experimental.pallas import tpu as pltpu

MASK_VALUE = -1e30  # finite mask value (avoids -inf -> NaN in tiled online softmax)


# ----------------------------------------------------------------------------
# Linear kernel:  y = x @ W + b   (W pre-transposed to (in, out), bf16 on the MXU)
# ----------------------------------------------------------------------------
def _linear_kernel(x_ref, w_ref, b_ref, o_ref):
    x = x_ref[...].astype(jnp.bfloat16)                    # bf16 MXU inputs
    acc = jnp.dot(x, w_ref[...], preferred_element_type=jnp.float32)
    o_ref[...] = (acc + b_ref[...]).astype(o_ref.dtype)    # bias added in f32


def _linear(x2d, w_t, b2d, out_dtype, row_tile):
    rows, c_in = x2d.shape
    c_out = w_t.shape[1]
    assert rows % row_tile == 0
    return pl.pallas_call(
        _linear_kernel,
        out_shape=jax.ShapeDtypeStruct((rows, c_out), out_dtype),
        grid=(rows // row_tile,),
        in_specs=[
            pl.BlockSpec((row_tile, c_in), lambda r: (r, 0)),
            pl.BlockSpec((c_in, c_out), lambda r: (0, 0)),   # constant -> fetched once
            pl.BlockSpec((1, c_out), lambda r: (0, 0)),
        ],
        out_specs=pl.BlockSpec((row_tile, c_out), lambda r: (r, 0)),
        compiler_params=pltpu.CompilerParams(dimension_semantics=("parallel",)),
    )(x2d, w_t, b2d)


# ----------------------------------------------------------------------------
# Flash-attention kernel (one (batch*head, q-tile) pair per accumulator sweep)
# ----------------------------------------------------------------------------
def _flash_attn_kernel(q_ref, k_ref, v_ref, o_ref, m_ref, l_ref, acc_ref, *, sm_scale):
    qi = pl.program_id(1)
    ki = pl.program_id(2)
    tq = q_ref.shape[0]
    tk = k_ref.shape[0]

    @pl.when(ki == 0)
    def _init():
        m_ref[...] = jnp.full(m_ref.shape, MASK_VALUE, jnp.float32)
        l_ref[...] = jnp.zeros(l_ref.shape, jnp.float32)
        acc_ref[...] = jnp.zeros(acc_ref.shape, jnp.float32)

    # Block-level causality: skip KV blocks that lie entirely above the diagonal.
    @pl.when(ki * tk <= qi * tq + (tq - 1))
    def _compute():
        q = q_ref[...] * sm_scale          # fold 1/sqrt(D) into q (T*D muls, not T*T)
        k = k_ref[...]
        v = v_ref[...]
        # q @ k.T without materializing a transpose (NT contraction on the MXU).
        s = lax.dot_general(q, k, (((1,), (1,)), ((), ())),
                            preferred_element_type=jnp.float32)        # (tq, tk) f32

        # Per-block causal mask from global indices; finite fill value.
        row = qi * tq + lax.broadcasted_iota(jnp.int32, (tq, tk), 0)
        col = ki * tk + lax.broadcasted_iota(jnp.int32, (tq, tk), 1)
        s = jnp.where(row >= col, s, MASK_VALUE)

        # Online softmax update (all softmax math in f32).
        m_prev = m_ref[...]
        m_new = jnp.maximum(m_prev, jnp.max(s, axis=-1, keepdims=True))
        alpha = jnp.exp(m_prev - m_new)
        p = jnp.exp(s - m_new)
        l_ref[...] = alpha * l_ref[...] + jnp.sum(p, axis=-1, keepdims=True)
        acc_ref[...] = alpha * acc_ref[...] + jnp.dot(
            p.astype(v.dtype), v, preferred_element_type=jnp.float32)  # bf16 PV matmul
        m_ref[...] = m_new

    @pl.when(ki == pl.num_programs(2) - 1)
    def _finalize():
        inv_l = pl.reciprocal(l_ref[...], approx=True)   # EUP slot, not VALU divide
        o_ref[...] = (acc_ref[...] * inv_l).astype(o_ref.dtype)


def _flash_attention(q, k, v, q_tile, kv_tile, sm_scale):
    bh, t, d = q.shape
    assert t % q_tile == 0 and t % kv_tile == 0
    n_qt, n_kt = t // q_tile, t // kv_tile
    kernel = functools.partial(_flash_attn_kernel, sm_scale=sm_scale)
    return pl.pallas_call(
        kernel,
        out_shape=jax.ShapeDtypeStruct((bh, t, d), q.dtype),
        grid=(bh, n_qt, n_kt),
        in_specs=[
            pl.BlockSpec((None, q_tile, d), lambda b, qi, ki: (b, qi, 0)),
            pl.BlockSpec((None, kv_tile, d), lambda b, qi, ki: (b, ki, 0)),
            pl.BlockSpec((None, kv_tile, d), lambda b, qi, ki: (b, ki, 0)),
        ],
        out_specs=pl.BlockSpec((None, q_tile, d), lambda b, qi, ki: (b, qi, 0)),
        scratch_shapes=[
            pltpu.VMEM((q_tile, 1), jnp.float32),   # running max m
            pltpu.VMEM((q_tile, 1), jnp.float32),   # running denom l
            pltpu.VMEM((q_tile, d), jnp.float32),   # output accumulator
        ],
        compiler_params=pltpu.CompilerParams(
            dimension_semantics=("parallel", "parallel", "arbitrary")),
    )(q, k, v)


# ----------------------------------------------------------------------------
# Full module forward
# ----------------------------------------------------------------------------
def _pick_tile(n, pref):
    """Largest divisor of n that is <= pref and a multiple of 8 (else n itself)."""
    if n <= pref:
        return n
    t = (pref // 8) * 8
    while t >= 8:
        if n % t == 0:
            return t
        t -= 8
    return n


def causal_self_attention(x, w_attn, b_attn, w_proj, b_proj, n_head,
                          *, q_tile=None, kv_tile=None):
    """x: (B, T, C); w_attn: (3C, C); b_attn: (3C,); w_proj: (C, C); b_proj: (C,)."""
    B, T, C = x.shape
    assert C % n_head == 0
    D = C // n_head

    q_tile = q_tile or _pick_tile(T, 128)
    kv_tile = kv_tile or _pick_tile(T, 128)

    # Weights pre-transposed to (in, out) and cast to bf16 for the MXU; biases f32.
    wqkv_t = jnp.transpose(w_attn).astype(jnp.bfloat16)     # (C, 3C)
    wproj_t = jnp.transpose(w_proj).astype(jnp.bfloat16)    # (C, C)
    bqkv2 = b_attn.reshape(1, 3 * C).astype(jnp.float32)
    bproj2 = b_proj.reshape(1, C).astype(jnp.float32)

    rows = B * T
    row_tile = _pick_tile(rows, 256)

    # 1) fused QKV projection; keep activations bf16 for the attention matmuls.
    qkv = _linear(x.reshape(rows, C), wqkv_t, bqkv2, jnp.bfloat16, row_tile)  # (B*T, 3C)

    # 2) split heads (layout plumbing, done in XLA outside the kernels).
    qkv = qkv.reshape(B, T, 3, n_head, D)
    q = qkv[:, :, 0].transpose(0, 2, 1, 3).reshape(B * n_head, T, D)
    k = qkv[:, :, 1].transpose(0, 2, 1, 3).reshape(B * n_head, T, D)
    v = qkv[:, :, 2].transpose(0, 2, 1, 3).reshape(B * n_head, T, D)

    # 3) flash attention with online softmax and block-causal skipping.
    y = _flash_attention(q, k, v, q_tile, kv_tile, 1.0 / math.sqrt(D))  # (B*H, T, D) bf16

    # 4) merge heads and project back to C, output in the input dtype.
    y = y.reshape(B, n_head, T, D).transpose(0, 2, 1, 3).reshape(rows, C)
    out = _linear(y, wproj_t, bproj2, x.dtype, row_tile)
    return out.reshape(B, T, C)


# ----------------------------------------------------------------------------
# Pure-JAX f32 reference mirroring the PyTorch forward (dropout = identity)
# ----------------------------------------------------------------------------
def _reference(x, w_attn, b_attn, w_proj, b_proj, n_head):
    B, T, C = x.shape
    D = C // n_head
    qkv = jnp.einsum('btc,oc->bto', x, w_attn) + b_attn       # (B, T, 3C)
    q, k, v = jnp.split(qkv, 3, axis=2)
    q = q.reshape(B, T, n_head, D).transpose(0, 2, 1, 3)
    k = k.reshape(B, T, n_head, D).transpose(0, 2, 1, 3)
    v = v.reshape(B, T, n_head, D).transpose(0, 2, 1, 3)
    att = jnp.einsum('bhtd,bhsd->bhts', q, k) * (1.0 / math.sqrt(D))
    mask = jnp.tril(jnp.ones((T, T), dtype=bool))
    att = jnp.where(mask[None, None], att, -jnp.inf)
    att = jax.nn.softmax(att, axis=-1)
    y = jnp.einsum('bhts,bhsd->bhtd', att, v)
    y = y.transpose(0, 2, 1, 3).reshape(B, T, C)
    return jnp.einsum('btc,oc->bto', y, w_proj) + b_proj


if __name__ == "__main__":
    # small GPT-style config: n_embd=32, n_head=4, T=16 (block_size >= T), batch B=2
    B, T, C, n_head = 2, 16, 32, 4

    key = jax.random.PRNGKey(0)
    kx, kw1, kb1, kw2, kb2 = jax.random.split(key, 5)

    x = jax.random.normal(kx, (B, T, C), dtype=jnp.float32)
    w_attn = 0.02 * jax.random.normal(kw1, (3 * C, C), dtype=jnp.float32)
    b_attn = 0.02 * jax.random.normal(kb1, (3 * C,), dtype=jnp.float32)
    w_proj = 0.02 * jax.random.normal(kw2, (C, C), dtype=jnp.float32)
    b_proj = 0.02 * jax.random.normal(kb2, (C,), dtype=jnp.float32)

    # q_tile/kv_tile=8 exercise the multi-tile online-softmax and block-causal-skip paths.
    out = causal_self_attention(x, w_attn, b_attn, w_proj, b_proj, n_head,
                                q_tile=8, kv_tile=8)
    out = jax.block_until_ready(out)

    ref = jax.block_until_ready(_reference(x, w_attn, b_attn, w_proj, b_proj, n_head))
    # bf16 MXU inputs (f32 accumulation / f32 softmax) vs f32 reference -> modest tol.
    np.testing.assert_allclose(np.asarray(out), np.asarray(ref), atol=5e-3, rtol=5e-2)

    print("KERNEL_OK")
</pallas_src>

<mosaic_0001>
module attributes {stable_mosaic.version = 11 : i64} {
  func.func @_linear_kernel(%arg0: i32, %arg1: memref<32x32xf32, #tpu.memory_space<vmem>>, %arg2: memref<32x96xbf16, #tpu.memory_space<vmem>>, %arg3: memref<1x96xf32, #tpu.memory_space<vmem>>, %arg4: memref<32x96xbf16, #tpu.memory_space<vmem>>) attributes {dimension_semantics = [#tpu.dimension_semantics<parallel>], iteration_bounds = array<i64: 1>, scalar_prefetch = 0 : i64, scratch_operands = 0 : i64, tpu.core_type = #tpu.core_type<tc>, window_params = [{transform_indices = @transform_0, window_bounds = array<i64: 32, 32>}, {pipeline_mode = #tpu.pipeline_mode<synchronous>, transform_indices = @transform_1, window_bounds = array<i64: 32, 96>}, {pipeline_mode = #tpu.pipeline_mode<synchronous>, transform_indices = @transform_2, window_bounds = array<i64: 1, 96>}, {transform_indices = @transform_3, window_bounds = array<i64: 32, 96>}]} {
    %c0 = arith.constant 0 : index
    %c0_0 = arith.constant 0 : index
    %0 = vector.load %arg1[%c0, %c0_0] : memref<32x32xf32, #tpu.memory_space<vmem>>, vector<32x32xf32>
    %1 = arith.truncf %0 : vector<32x32xf32> to vector<32x32xbf16>
    %c0_1 = arith.constant 0 : index
    %c0_2 = arith.constant 0 : index
    %2 = vector.load %arg2[%c0_1, %c0_2] : memref<32x96xbf16, #tpu.memory_space<vmem>>, vector<32x96xbf16>
    %cst = arith.constant dense<0.000000e+00> : vector<32x96xf32>
    %3 = tpu.matmul %1, %2, %cst {dimension_numbers = #tpu.dot_dimension_numbers<[1], [0], [0], [1], [0, 0, 1, 1], [], []>} : vector<32x32xbf16>, vector<32x96xbf16>, vector<32x96xf32> -> vector<32x96xf32>
    %c0_3 = arith.constant 0 : index
    %c0_4 = arith.constant 0 : index
    %4 = vector.load %arg3[%c0_3, %c0_4] : memref<1x96xf32, #tpu.memory_space<vmem>>, vector<1x96xf32>
    %5 = vector.broadcast %4 : vector<1x96xf32> to vector<32x96xf32>
    %6 = arith.addf %3, %5 : vector<32x96xf32>
    %7 = arith.truncf %6 : vector<32x96xf32> to vector<32x96xbf16>
    %c0_5 = arith.constant 0 : index
    %c0_6 = arith.constant 0 : index
    %8 = vector.load %arg4[%c0_5, %c0_6] : memref<32x96xbf16, #tpu.memory_space<vmem>>, vector<32x96xbf16>
    tpu.vector_store %arg4[%c0_5, %c0_6], %7 {strides = array<i32>} : memref<32x96xbf16, #tpu.memory_space<vmem>>, vector<32x96xbf16>,
    return
  }
  func.func @transform_0(%arg0: i32) -> (i32, i32) {
    %c0_i32 = arith.constant 0 : i32
    %c0_i32_0 = arith.constant 0 : i32
    return %arg0, %c0_i32 : i32, i32
  }
  func.func @transform_1(%arg0: i32) -> (i32, i32) {
    %c0_i32 = arith.constant 0 : i32
    %c0_i32_0 = arith.constant 0 : i32
    %c0_i32_1 = arith.constant 0 : i32
    return %c0_i32, %c0_i32_0 : i32, i32
  }
  func.func @transform_2(%arg0: i32) -> (i32, i32) {
    %c0_i32 = arith.constant 0 : i32
    %c0_i32_0 = arith.constant 0 : i32
    %c0_i32_1 = arith.constant 0 : i32
    return %c0_i32, %c0_i32_0 : i32, i32
  }
  func.func @transform_3(%arg0: i32) -> (i32, i32) {
    %c0_i32 = arith.constant 0 : i32
    %c0_i32_0 = arith.constant 0 : i32
    return %arg0, %c0_i32 : i32, i32
  }
}

</mosaic_0001>

<llo_original>
// kernel: tpu_custom_call.1
$region0: #{tpu_custom_call.1}
  #allocation0 [shape = 'u32[]', space=smem, size = 0x4, offset = 0x4, fixed_abs, tag = 'smem constant byte address 0x4 - core index']
  #allocation1 [shape = 'u32[144,128]{1,0:T(1,128)}', space=vmem, size = 0x12000, scoped, tag = 'internal scratch']
  %s0 = inlined_call_operand.hbm [shape: f32[32,32], index: 0, kind: input, shape index: {}]
  %s1 = inlined_call_operand.hbm [shape: bf16[32,96], index: 1, kind: input, shape index: {}]
  %s2 = inlined_call_operand.vmem [shape: f32[1,96], index: 2, kind: input, shape index: {}]
  %s3 = inlined_call_operand.hbm [shape: bf16[32,96], index: 3, kind: output, shape index: {}]
  %s4 = sld [smem:[#allocation0]]
  $region30: #{tpu_custom_call.1} parent=0
    _
  %s6 = ssub.s32 1, %s4
  %s7 = scalar_select 0, %s6, %s4
  $region1: #{tpu_custom_call.1} parent=0
    #allocation2 [shape = 'u8[16384]{0}', space=vmem, size = 0x4000, scoped, tag = 'input window, operand 0, single buffered']
    #allocation3 [shape = 's32[1]{0}', space=sflag, size = 0x4, scoped, tag = 'scoped memory for tpu_custom_call.1']
    #allocation4 [shape = 's32[1]{0}', space=sflag, size = 0x4, scoped, tag = 'scoped memory for tpu_custom_call.1']
    #allocation5 [shape = 'u8[8192]{0}', space=vmem, size = 0x2000, scoped, tag = 'input window, operand 1, single buffered']
    #allocation6 [shape = 's32[1]{0}', space=sflag, size = 0x4, scoped, tag = 'scoped memory for tpu_custom_call.1']
    #allocation7 [shape = 'u8[8192]{0}', space=vmem, size = 0x2000, scoped, tag = 'output window, operand 0, single buffered']
    %8 = vsyncpa [#allocation3], 0
    %9 = vsyncpa [#allocation6], 0
    %10 = vsyncpa [#allocation4], 0
    // Predicated region
    $region2: #{tpu_custom_call.1} parent=1 // pred_check
      _
    $region3: #{tpu_custom_call.1} parent=1 // pred_check_branch
      %12 = sbr.rel (0) target = $region5
    $region4: #{tpu_custom_call.1} parent=1 // pred_region
      %s14 = ssub.s32 512, 512
      %15 = vsyncadd [#allocation3], %s14
      %s16 = sshll.u32 [#allocation2], 4
      %s17 = int_to_ptr.vmem [resolvable:$true] %s16
      %22 = dma.hbm_to_vmem [thread:$0]  %s0, 512, %s17, [#allocation3], 128, 128, 8
    $region5: #{tpu_custom_call.1} parent=1 // pred_fallthru
      _
    // Predicated region
    $region6: #{tpu_custom_call.1} parent=1 // pred_check
      _
    $region7: #{tpu_custom_call.1} parent=1 // pred_check_branch
      %24 = sbr.rel (0) target = $region9
    $region8: #{tpu_custom_call.1} parent=1 // pred_region
      %s26 = ssub.s32 256, 256
      %27 = vsyncadd [#allocation6], %s26
      %s28 = sshll.u32 [#allocation5], 4
      %s29 = int_to_ptr.vmem [resolvable:$true] %s28
      %34 = dma.hbm_to_vmem [thread:$0]  %s1, 256, %s29, [#allocation6], 64, 64, 4
    $region9: #{tpu_custom_call.1} parent=1 // pred_fallthru
      _
    // Predicated region
    $region10: #{tpu_custom_call.1} parent=1 // pred_check
      _
    $region11: #{tpu_custom_call.1} parent=1 // pred_check_branch
      %36 = sbr.rel (0) target = $region13
    $region12: #{tpu_custom_call.1} parent=1 // pred_region
      _
    $region13: #{tpu_custom_call.1} parent=1 // pred_fallthru
      _
    // Predicated region
    $region14: #{tpu_custom_call.1} parent=1 // pred_check
      _
    $region15: #{tpu_custom_call.1} parent=1 // pred_check_branch
      %38 = sbr.rel (0) target = $region17
    $region16: #{tpu_custom_call.1} parent=1 // pred_region
      %39 = dma.done [#allocation3], 512
    $region17: #{tpu_custom_call.1} parent=1 // pred_fallthru
      _
    // Predicated region
    $region18: #{tpu_custom_call.1} parent=1 // pred_check
      _
    $region19: #{tpu_custom_call.1} parent=1 // pred_check_branch
      %41 = sbr.rel (0) target = $region21
    $region20: #{tpu_custom_call.1} parent=1 // pred_region
      %42 = dma.done [#allocation6], 256
    $region21: #{tpu_custom_call.1} parent=1 // pred_fallthru
      _
    %v44 = vld [vmem:[#allocation2] sm:$0xff]
    %v45 = vld [vmem:[#allocation2 + $0x8] sm:$0xff]
    %v46 = vld [vmem:[#allocation2 + $0x10] sm:$0xff]
    %v47 = vld [vmem:[#allocation2 + $0x18] sm:$0xff]
    %v48 = vpack.c.bf16 %v45, %v44
    %v49 = vpack.c.bf16 %v47, %v46
    %v50 = vld [vmem:[#allocation5] sm:$0xf]
    %v51 = vld [vmem:[#allocation5 + $0x4] sm:$0xf]
    %v52 = vld [vmem:[#allocation5 + $0x8] sm:$0xf]
    %v53 = vld [vmem:[#allocation5 + $0xc] sm:$0xf]
    %v54 = vld [vmem:[%s2] sm:$0x1]
    %v56 = vlaneseq
    %v57 = vshrl.u32 %v56, 7
    %v58 = vsub.s32 0, %v57
    %v59 = vrot.slane %v54, %v58
    %v65 = vunpack.c.l.b16 %v50
    %v66 = vunpack.c.l.b16 %v51
    %v67 = vunpack.c.l.b16 %v52
    %v68 = vunpack.c.l.b16 %v53
    %v69 = vpack.c.b16 %v66, %v65
    %v70 = vpack.c.b16 %v68, %v67
    %vm73 = vcmask 261120
    %v75 = vsel %vm73, %v48, 0
    %v78 = vsel %vm73, %v49, 0
    %80 = vmatprep.subr.bf16.mxu0 0
    %81 = vmatpush1.bf16.msra.mxu0 %v69
    %82 = vmatprep.subr.bf16.mxu0 0
    %83 = vmatpush1.bf16.msra.mxu0 %v70
    %84 = vmatprep.subr.bf16.mxu0 0
    %85 = vmatpush1.bf16.msra.mxu0 0
    %86 = vmatprep.subr.bf16.mxu0 0
    %87 = vmatpush1.bf16.msra.mxu0 0
    %88 = vmatprep.subr.bf16.mxu0 0
    %89 = vmatpush1.bf16.msra.mxu0 0
    %90 = vmatprep.subr.bf16.mxu0 0
    %91 = vmatpush1.bf16.msra.mxu0 0
    %92 = vmatprep.subr.bf16.mxu0 0
    %93 = vmatpush1.bf16.msra.mxu0 0
    %94 = vmatprep.subr.bf16.mxu0 0
    %95 = vmatpush1.bf16.msra.mxu0 0
    %96 = vmatprep.subr.bf16.mxu0 0
    %97 = vmatpush1.bf16.msra.mxu0 0
    %98 = vmatprep.subr.bf16.mxu0 0
    %99 = vmatpush1.bf16.msra.mxu0 0
    %100 = vmatprep.subr.bf16.mxu0 0
    %101 = vmatpush1.bf16.msra.mxu0 0
    %102 = vmatprep.subr.bf16.mxu0 0
    %103 = vmatpush1.bf16.msra.mxu0 0
    %104 = vmatprep.subr.bf16.mxu0 0
    %105 = vmatpush1.bf16.msra.mxu0 0
    %106 = vmatprep.subr.bf16.mxu0 0
    %107 = vmatpush1.bf16.msra.mxu0 0
    %108 = vmatprep.subr.bf16.mxu0 0
    %109 = vmatpush1.bf16.msra.mxu0 0
    %110 = vmatprep.subr.bf16.mxu0 0
    %111 = vmatpush1.bf16.msra.mxu0 0
    %112 = vmatprep.mubr.bf16.mxu0 0
    %113 = vmatmul.mubr.bf16.gmra.mrb[0].mxu0 %v75
    %v114 = vpop.f32.mrb[0].mxu0
    %v115 = vadd.f32 %v59, %v114
    %v116 = vpop.f32.mrb[0].mxu0
    %v117 = vpop.f32.mrb[0].mxu0
    %v118 = vadd.f32 %v59, %v117
    %v119 = vpop.f32.mrb[0].mxu0
    %120 = vmatprep.mubr.bf16.mxu0 0
    %121 = vmatmul.mubr.bf16.gmra.mrb[0].mxu0 %v78
    %v122 = vpop.f32.mrb[0].mxu0
    %v123 = vadd.f32 %v59, %v122
    %v124 = vpop.f32.mrb[0].mxu0
    %v125 = vpop.f32.mrb[0].mxu0
    %v126 = vadd.f32 %v59, %v125
    %v127 = vpop.f32.mrb[0].mxu0
    %128 = vdwg.mxu0
    %v129 = vpack.c.bf16 %v118, %v115
    %v130 = vpack.c.bf16 %v126, %v123
    %v133 = vunpack.c.l.b16 %v129
    %v134 = vunpack.c.h.b16 %v129
    %v135 = vunpack.c.l.b16 %v130
    %v136 = vunpack.c.h.b16 %v130
    %v137 = vpack.c.b16 %v133, %v133
    %v138 = vpack.c.b16 %v134, %v134
    %v139 = vpack.c.b16 %v135, %v135
    %v140 = vpack.c.b16 %v136, %v136
    %vm145 = vcmask 781312
    %146 = vst.msk [vmem:[#allocation7] sm:$0xf] %vm145, %v137
    %147 = vst.msk [vmem:[#allocation7 + $0x4] sm:$0xf] %vm145, %v138
    %148 = vst.msk [vmem:[#allocation7 + $0x8] sm:$0xf] %vm145, %v139
    %149 = vst.msk [vmem:[#allocation7 + $0xc] sm:$0xf] %vm145, %v140
    // Predicated region
    $region22: #{tpu_custom_call.1} parent=1 // pred_check
      _
    $region23: #{tpu_custom_call.1} parent=1 // pred_check_branch
      %151 = sbr.rel (0) target = $region25
    $region24: #{tpu_custom_call.1} parent=1 // pred_region
      %s153 = ssub.s32 256, 256
      %154 = vsyncadd [#allocation4], %s153
      %s155 = sshll.u32 [#allocation7], 4
      %s156 = int_to_ptr.vmem [resolvable:$true] %s155
      %161 = dma.vmem_to_hbm [thread:$0]  %s156, 256, %s3, [#allocation4], 64, 64, 4
    $region25: #{tpu_custom_call.1} parent=1 // pred_fallthru
      _
    // Predicated region
    $region26: #{tpu_custom_call.1} parent=1 // pred_check
      _
    $region27: #{tpu_custom_call.1} parent=1 // pred_check_branch
      %163 = sbr.rel (0) target = $region29
    $region28: #{tpu_custom_call.1} parent=1 // pred_region
      %164 = dma.done [#allocation4], 256
    $region29: #{tpu_custom_call.1} parent=1 // pred_fallthru
      _
    %165 = vsyncpa [#allocation3], 1
    %166 = vsyncpa [#allocation6], 1
    %167 = vsyncpa [#allocation4], 1

</llo_original>
